<compile_context>
chip_gen: v7x
topology: tpu7x:2x2x1
jax: 0.10.0
libtpu: 0.0.40
codegen_flags: <defaults>
</compile_context>

<pallas_src>
import jax
import jax.numpy as jnp
from jax.experimental import pallas as pl
from jax.experimental.pallas import tpu as pltpu


# ----------------------------------------------------------------------------
# Fused Pallas kernel: Linear+ReLU -> Linear+tanh -> residual Linear
# ----------------------------------------------------------------------------
def _fused_pipeline_kernel(x_ref, w0_ref, b0_ref, wcat_ref, b12_ref, w2_ref,
                           hidden_ref, out_ref):
    H = w0_ref.shape[1]

    # layer 0: Linear + ReLU  (bf16 MXU inputs, f32 accumulation + f32 epilogue)
    xb = x_ref[...].astype(w0_ref.dtype)
    h = jnp.dot(xb, w0_ref[...], preferred_element_type=jnp.float32) + b0_ref[...]
    h = jnp.maximum(h, 0.0)

    # layers 1+2 fused: one wide matmul  h @ [W1 | W2]  (+ [b1 | b2]).
    # pre[:, :H] = h@W1 + b1  (tanh operand);  pre[:, H:] = h@W2 + b2
    pre = jnp.dot(h.astype(wcat_ref.dtype), wcat_ref[...],
                  preferred_element_type=jnp.float32) + b12_ref[...]
    t = jnp.tanh(pre[:, :H])                      # EUP slot

    # o = (h + t) @ W2 + b2 = (h@W2 + b2) + t@W2 ; first term is pre[:, H:]
    o = pre[:, H:] + jnp.dot(t.astype(w2_ref.dtype), w2_ref[...],
                             preferred_element_type=jnp.float32)

    hidden_ref[...] = h.astype(hidden_ref.dtype)
    out_ref[...] = o.astype(out_ref.dtype)


def _round_up(x, m):
    return ((x + m - 1) // m) * m


def _choose_tm(batch, target_tm=1024):
    """Adaptive row tile: big tiles (<= ~target_tm) to amortize per-step overhead,
    grid length even/>=2 when the batch allows it (v7x megacore), multiple of 8."""
    if batch <= 16:
        return _round_up(batch, 8)                      # single tiny tile
    if batch <= 2 * target_tm:
        return _round_up(pl.cdiv(batch, 2), 8)          # exactly 2 tiles
    n_tiles = _round_up(pl.cdiv(batch, target_tm), 2)   # even #tiles, ~target rows
    return _round_up(pl.cdiv(batch, n_tiles), 8)


def fused_pipeline_forward(x, w0, b0, wcat, b12, w2, *, target_tm=1024):
    """Runs the fused 3-layer pipeline.  Returns (hidden[B,H], out[B,dout])."""
    B, din = x.shape
    H = w0.shape[1]
    dout = w2.shape[1]

    tm = _choose_tm(B, target_tm)
    grid = (pl.cdiv(B, tm),)      # ragged last block handled by Pallas (no jnp.pad)

    const = lambda i: (0, 0)      # params: DMA'd once, VMEM-resident across steps
    row = lambda i: (i, 0)        # activations / outputs stream by row tile

    hidden, out = pl.pallas_call(
        _fused_pipeline_kernel,
        out_shape=(jax.ShapeDtypeStruct((B, H), x.dtype),
                   jax.ShapeDtypeStruct((B, dout), x.dtype)),
        grid=grid,
        in_specs=[
            pl.BlockSpec((tm, din), row),
            pl.BlockSpec((din, H), const),
            pl.BlockSpec((1, H), const),
            pl.BlockSpec((H, H + dout), const),
            pl.BlockSpec((1, H + dout), const),
            pl.BlockSpec((H, dout), const),
        ],
        out_specs=(pl.BlockSpec((tm, H), row),
                   pl.BlockSpec((tm, dout), row)),
        compiler_params=pltpu.CompilerParams(
            dimension_semantics=("parallel",)),   # rows shard across TCs on v7x
    )(x, w0, b0, wcat, b12, w2)
    return hidden, out


# ----------------------------------------------------------------------------
# Fused sub-module (parameters bound at construction, deterministic init)
# ----------------------------------------------------------------------------
class FusedPipeline:
    """One module computing ('hidden', 'out') in a single Pallas kernel."""

    def __init__(self, key, din, h, dout, dtype=jnp.float32,
                 matmul_dtype=jnp.bfloat16, target_tm=1024):
        k0w, k0b, k1w, k1b, k2w, k2b = jax.random.split(key, 6)

        def init(kw, kb, fan_in, fan_out):
            bound = 1.0 / (fan_in ** 0.5)       # PyTorch-Linear-style uniform init
            w = jax.random.uniform(kw, (fan_in, fan_out), dtype, -bound, bound)
            b = jax.random.uniform(kb, (1, fan_out), dtype, -bound, bound)
            return w, b

        # f32 master parameters (reference numerics)
        self.w0, self.b0 = init(k0w, k0b, din, h)
        self.w1, self.b1 = init(k1w, k1b, h, h)
        self.w2, self.b2 = init(k2w, k2b, h, dout)

        # Kernel-ready parameters:
        #  * weights cast once to bf16 (MXU inputs; accumulation stays f32 in-kernel)
        #  * W1|W2 concatenated -> single wide matmul off the shared 'h' input
        #  * b1|b2 concatenated -> single f32 bias slab added after that matmul
        self.w0_k = self.w0.astype(matmul_dtype)
        self.wcat_k = jnp.concatenate([self.w1, self.w2], axis=1).astype(matmul_dtype)
        self.w2_k = self.w2.astype(matmul_dtype)
        self.b0_k = self.b0
        self.b12_k = jnp.concatenate([self.b1, self.b2], axis=1)

        self.h = h
        self.dout = dout
        self.target_tm = target_tm

    def __call__(self, x):
        return fused_pipeline_forward(
            x, self.w0_k, self.b0_k, self.wcat_k, self.b12_k, self.w2_k,
            target_tm=self.target_tm)


# ----------------------------------------------------------------------------
# ComposableModule: faithful port of the routing semantics of forward()
# ----------------------------------------------------------------------------
class ComposableModule:
    def __init__(self, modules):
        self._module_list = modules

    def __call__(self, input_dict):
        output_dict = {}
        x = None
        for module in self._module_list:
            module_args = []
            input_keys = module.get("input", None)
            if input_keys is not None:
                if not isinstance(input_keys, list):
                    input_keys = [input_keys]
                for key in input_keys:
                    if key == "...":
                        if isinstance(x, tuple):
                            module_args += list(x)
                        else:
                            module_args.append(x)
                    else:
                        val = input_dict.get(key, output_dict.get(key, None))
                        module_args.append(val)
            elif x is None:
                raise Exception(
                    f"No valid input provided for {module.get('type')}. "
                    "Check your configuration for input keys."
                )
            # TODO(synk): QuantTensor (brevitas) routing branch has no JAX/Pallas
            # equivalent; skipped.
            elif isinstance(x, tuple):
                module_args += list(x)
            else:
                module_args.append(x)
            x = module["module"](*module_args)
            output_keys = module.get("output", None)
            if output_keys is not None:
                if isinstance(output_keys, list):
                    for i, item in enumerate(x):
                        output_dict[output_keys[i]] = item
                else:
                    output_dict[output_keys] = x
        return output_dict  # (TensorDict ~ plain dict of arrays here)


# ----------------------------------------------------------------------------
# Reference (pure jnp, f32 weights) for correctness checking
# ----------------------------------------------------------------------------
def reference_forward(x, m):
    h = jnp.maximum(x @ m.w0 + m.b0, 0.0)            # "hidden"
    t = jnp.tanh(h @ m.w1 + m.b1)                    # chained x
    out = (h + t) @ m.w2 + m.b2                      # "out"
    return {"hidden": h, "out": out}


if __name__ == "__main__":
    key = jax.random.PRNGKey(0)
    k_x, k_m = jax.random.split(key)

    # Non-multiple-of-tile batch exercises the ragged last block + 2-step grid.
    B, Din, H, Dout = 200, 32, 64, 16
    x = jax.random.normal(k_x, (B, Din), jnp.float32)

    fused = FusedPipeline(k_m, Din, H, Dout)

    # Single fused module produces the tuple (hidden, out); ComposableModule's
    # list-output routing assigns them to the named keys, matching the original
    # three-module wiring's observable outputs.
    model = ComposableModule([
        {"type": "FusedLinearReluTanhResidual", "input": "obs",
         "module": fused, "output": ["hidden", "out"]},
    ])

    out_dict = model({"obs": x})
    jax.block_until_ready(out_dict["out"])

    ref = reference_forward(x, fused)
    assert out_dict["hidden"].shape == (B, H)
    assert out_dict["out"].shape == (B, Dout)
    # bf16 matmul inputs (f32 accumulation) => relaxed-but-meaningful tolerances;
    # wiring/layout bugs would produce O(1) errors, far outside these bounds.
    assert jnp.allclose(out_dict["hidden"], ref["hidden"], atol=3e-2, rtol=3e-2)
    assert jnp.allclose(out_dict["out"], ref["out"], atol=5e-2, rtol=5e-2)

    print("KERNEL_OK")
</pallas_src>

<mosaic_0001>
module attributes {stable_mosaic.version = 11 : i64} {
  func.func @_fused_pipeline_kernel(%arg0: i32, %arg1: memref<104x32xf32, #tpu.memory_space<vmem>>, %arg2: memref<32x64xbf16, #tpu.memory_space<vmem>>, %arg3: memref<1x64xf32, #tpu.memory_space<vmem>>, %arg4: memref<64x80xbf16, #tpu.memory_space<vmem>>, %arg5: memref<1x80xf32, #tpu.memory_space<vmem>>, %arg6: memref<64x16xbf16, #tpu.memory_space<vmem>>, %arg7: memref<104x64xf32, #tpu.memory_space<vmem>>, %arg8: memref<104x16xf32, #tpu.memory_space<vmem>>) attributes {dimension_semantics = [#tpu.dimension_semantics<parallel>], iteration_bounds = array<i64: 2>, scalar_prefetch = 0 : i64, scratch_operands = 0 : i64, tpu.core_type = #tpu.core_type<tc>, window_params = [{transform_indices = @transform_0, window_bounds = array<i64: 104, 32>}, {pipeline_mode = #tpu.pipeline_mode<synchronous>, transform_indices = @transform_1, window_bounds = array<i64: 32, 64>}, {pipeline_mode = #tpu.pipeline_mode<synchronous>, transform_indices = @transform_2, window_bounds = array<i64: 1, 64>}, {pipeline_mode = #tpu.pipeline_mode<synchronous>, transform_indices = @transform_3, window_bounds = array<i64: 64, 80>}, {pipeline_mode = #tpu.pipeline_mode<synchronous>, transform_indices = @transform_4, window_bounds = array<i64: 1, 80>}, {pipeline_mode = #tpu.pipeline_mode<synchronous>, transform_indices = @transform_5, window_bounds = array<i64: 64, 16>}, {transform_indices = @transform_6, window_bounds = array<i64: 104, 64>}, {transform_indices = @transform_7, window_bounds = array<i64: 104, 16>}]} {
    %c0 = arith.constant 0 : index
    %c0_0 = arith.constant 0 : index
    %0 = vector.load %arg1[%c0, %c0_0] : memref<104x32xf32, #tpu.memory_space<vmem>>, vector<104x32xf32>
    %1 = arith.truncf %0 : vector<104x32xf32> to vector<104x32xbf16>
    %c0_1 = arith.constant 0 : index
    %c0_2 = arith.constant 0 : index
    %2 = vector.load %arg2[%c0_1, %c0_2] : memref<32x64xbf16, #tpu.memory_space<vmem>>, vector<32x64xbf16>
    %cst = arith.constant dense<0.000000e+00> : vector<104x64xf32>
    %3 = tpu.matmul %1, %2, %cst {dimension_numbers = #tpu.dot_dimension_numbers<[1], [0], [0], [1], [0, 0, 1, 1], [], []>} : vector<104x32xbf16>, vector<32x64xbf16>, vector<104x64xf32> -> vector<104x64xf32>
    %c0_3 = arith.constant 0 : index
    %c0_4 = arith.constant 0 : index
    %4 = vector.load %arg3[%c0_3, %c0_4] : memref<1x64xf32, #tpu.memory_space<vmem>>, vector<1x64xf32>
    %5 = vector.broadcast %4 : vector<1x64xf32> to vector<104x64xf32>
    %6 = arith.addf %3, %5 : vector<104x64xf32>
    %cst_5 = arith.constant 0.000000e+00 : f32
    %7 = vector.broadcast %cst_5 : f32 to vector<104x64xf32>
    %8 = arith.maximumf %6, %7 : vector<104x64xf32>
    %9 = arith.truncf %8 : vector<104x64xf32> to vector<104x64xbf16>
    %c0_6 = arith.constant 0 : index
    %c0_7 = arith.constant 0 : index
    %10 = vector.load %arg4[%c0_6, %c0_7] : memref<64x80xbf16, #tpu.memory_space<vmem>>, vector<64x80xbf16>
    %cst_8 = arith.constant dense<0.000000e+00> : vector<104x80xf32>
    %11 = tpu.matmul %9, %10, %cst_8 {dimension_numbers = #tpu.dot_dimension_numbers<[1], [0], [0], [1], [0, 0, 1, 1], [], []>} : vector<104x64xbf16>, vector<64x80xbf16>, vector<104x80xf32> -> vector<104x80xf32>
    %c0_9 = arith.constant 0 : index
    %c0_10 = arith.constant 0 : index
    %12 = vector.load %arg5[%c0_9, %c0_10] : memref<1x80xf32, #tpu.memory_space<vmem>>, vector<1x80xf32>
    %13 = vector.broadcast %12 : vector<1x80xf32> to vector<104x80xf32>
    %14 = arith.addf %11, %13 : vector<104x80xf32>
    %15 = vector.extract_strided_slice %14 {offsets = [0, 0], sizes = [104, 64], strides = [1, 1]} : vector<104x80xf32> to vector<104x64xf32>
    %16 = math.tanh %15 : vector<104x64xf32>
    %17 = vector.extract_strided_slice %14 {offsets = [0, 64], sizes = [104, 16], strides = [1, 1]} : vector<104x80xf32> to vector<104x16xf32>
    %18 = arith.truncf %16 : vector<104x64xf32> to vector<104x64xbf16>
    %c0_11 = arith.constant 0 : index
    %c0_12 = arith.constant 0 : index
    %19 = vector.load %arg6[%c0_11, %c0_12] : memref<64x16xbf16, #tpu.memory_space<vmem>>, vector<64x16xbf16>
    %cst_13 = arith.constant dense<0.000000e+00> : vector<104x16xf32>
    %20 = tpu.matmul %18, %19, %cst_13 {dimension_numbers = #tpu.dot_dimension_numbers<[1], [0], [0], [1], [0, 0, 1, 1], [], []>} : vector<104x64xbf16>, vector<64x16xbf16>, vector<104x16xf32> -> vector<104x16xf32>
    %21 = arith.addf %17, %20 : vector<104x16xf32>
    %c0_14 = arith.constant 0 : index
    %c0_15 = arith.constant 0 : index
    %22 = vector.load %arg7[%c0_14, %c0_15] : memref<104x64xf32, #tpu.memory_space<vmem>>, vector<104x64xf32>
    tpu.vector_store %arg7[%c0_14, %c0_15], %8 {strides = array<i32>} : memref<104x64xf32, #tpu.memory_space<vmem>>, vector<104x64xf32>,
    %c0_16 = arith.constant 0 : index
    %c0_17 = arith.constant 0 : index
    %23 = vector.load %arg8[%c0_16, %c0_17] : memref<104x16xf32, #tpu.memory_space<vmem>>, vector<104x16xf32>
    tpu.vector_store %arg8[%c0_16, %c0_17], %21 {strides = array<i32>} : memref<104x16xf32, #tpu.memory_space<vmem>>, vector<104x16xf32>,
    return
  }
  func.func @transform_0(%arg0: i32) -> (i32, i32) {
    %c0_i32 = arith.constant 0 : i32
    %c0_i32_0 = arith.constant 0 : i32
    return %arg0, %c0_i32 : i32, i32
  }
  func.func @transform_1(%arg0: i32) -> (i32, i32) {
    %c0_i32 = arith.constant 0 : i32
    %c0_i32_0 = arith.constant 0 : i32
    %c0_i32_1 = arith.constant 0 : i32
    return %c0_i32, %c0_i32_0 : i32, i32
  }
  func.func @transform_2(%arg0: i32) -> (i32, i32) {
    %c0_i32 = arith.constant 0 : i32
    %c0_i32_0 = arith.constant 0 : i32
    %c0_i32_1 = arith.constant 0 : i32
    return %c0_i32, %c0_i32_0 : i32, i32
  }
  func.func @transform_3(%arg0: i32) -> (i32, i32) {
    %c0_i32 = arith.constant 0 : i32
    %c0_i32_0 = arith.constant 0 : i32
    %c0_i32_1 = arith.constant 0 : i32
    return %c0_i32, %c0_i32_0 : i32, i32
  }
  func.func @transform_4(%arg0: i32) -> (i32, i32) {
    %c0_i32 = arith.constant 0 : i32
    %c0_i32_0 = arith.constant 0 : i32
    %c0_i32_1 = arith.constant 0 : i32
    return %c0_i32, %c0_i32_0 : i32, i32
  }
  func.func @transform_5(%arg0: i32) -> (i32, i32) {
    %c0_i32 = arith.constant 0 : i32
    %c0_i32_0 = arith.constant 0 : i32
    %c0_i32_1 = arith.constant 0 : i32
    return %c0_i32, %c0_i32_0 : i32, i32
  }
  func.func @transform_6(%arg0: i32) -> (i32, i32) {
    %c0_i32 = arith.constant 0 : i32
    %c0_i32_0 = arith.constant 0 : i32
    return %arg0, %c0_i32 : i32, i32
  }
  func.func @transform_7(%arg0: i32) -> (i32, i32) {
    %c0_i32 = arith.constant 0 : i32
    %c0_i32_0 = arith.constant 0 : i32
    return %arg0, %c0_i32 : i32, i32
  }
}

</mosaic_0001>

<llo_original>
// kernel: tpu_custom_call.1
$region0: #{tpu_custom_call.1}
  #allocation0 [shape = 'u32[]', space=smem, size = 0x4, offset = 0x4, fixed_abs, tag = 'smem constant byte address 0x4 - core index']
  #allocation1 [shape = 'u32[144,128]{1,0:T(1,128)}', space=vmem, size = 0x12000, scoped, tag = 'internal scratch']
  %s0 = inlined_call_operand.vmem [shape: f32[200,32], index: 0, kind: input, shape index: {}]
  %s1 = inlined_call_operand.vmem [shape: bf16[32,64], index: 1, kind: input, shape index: {}]
  %s2 = inlined_call_operand.vmem [shape: f32[1,64], index: 2, kind: input, shape index: {}]
  %s3 = inlined_call_operand.vmem [shape: bf16[64,80], index: 3, kind: input, shape index: {}]
  %s4 = inlined_call_operand.vmem [shape: f32[1,80], index: 4, kind: input, shape index: {}]
  %s5 = inlined_call_operand.vmem [shape: bf16[64,16], index: 5, kind: input, shape index: {}]
  %s6 = inlined_call_operand.vmem [shape: f32[200,64], index: 6, kind: output, shape index: {0}]
  %s7 = inlined_call_operand.vmem [shape: f32[200,16], index: 7, kind: output, shape index: {1}]
  %8 = xla_tuple %s6, %s7
  %s9 = sld [smem:[#allocation0]]
  $region161: #{tpu_custom_call.1} parent=0
    _
  %s11 = ssub.s32 1, %s9
  %s12 = scalar_select 0, %s11, %s9
  $region1: #{tpu_custom_call.1} parent=0
    #allocation2 [shape = 'u8[106496]{0}', space=vmem, size = 0x1a000, scoped, tag = 'output window, operand 0']
    #allocation3 [shape = 'u8[106496]{0}', space=vmem, size = 0x1a000, scoped, tag = 'output window, operand 1']
    loop: start=0, step=1, limit=4
    $region2: #{tpu_custom_call.1} parent=1 // loop_pre_header
      _
    $region3: #{tpu_custom_call.1} parent=1 // loop_header
      %s14 = sphi 0, %s18
      %p15 = scmp.ge.s32.totalorder %s14, 4
      %s24 = sphi 0, %s26
      %s27 = sphi 0, %s24
      %s28 = sphi 0, %s27
      %s44 = sphi 0, %s28
      %s48 = sphi 0, %s48
      %s50 = sphi 0, %s48
      %s51 = sphi 0, %s50
      %s65 = sphi 0, %s51
      %s69 = sphi 0, %s69
      %s71 = sphi 0, %s69
      %s72 = sphi 0, %s71
      %s86 = sphi 0, %s72
      %s90 = sphi 0, %s90
      %s92 = sphi 0, %s90
      %s93 = sphi 0, %s92
      %s107 = sphi 0, %s93
      %s111 = sphi 0, %s111
      %s113 = sphi 0, %s111
      %s114 = sphi 0, %s113
      %s128 = sphi 0, %s114
      %s132 = sphi 0, %s132
      %s134 = sphi 0, %s132
      %s135 = sphi 0, %s134
      %s149 = sphi 0, %s135
      %s155 = sphi 0, %s157
      %s158 = sphi 0, %s155
      %s159 = sphi 0, %s158
      %s175 = sphi 0, %s159
      %s181 = sphi 0, %s183
      %s184 = sphi 0, %s181
      %s185 = sphi 0, %s184
      %s201 = sphi 0, %s185
    $region4: #{tpu_custom_call.1} parent=1 // loop_header_branch
      %17 = sbr.rel (%p15) target = $region8
    $region5: #{tpu_custom_call.1} parent=1 // loop_body
      %s19 = ssub.s32 %s14, 1
      %s20 = ssub.s32 %s14, 2
      %s21 = sadd.s32 %s14, 1
      %s22 = ssub.s32 %s14, %s21
      %p23 = scmp.eq.s32.totalorder %s22, 0
      %s25 = sadd.s32 %s24, 1
      %s26 = scalar_select %p23, %s24, %s25
      %p29 = pneg %p23
      %p30 = scmp.eq.s32.totalorder %s14, 1
      %p31 = por %p29, %p30
      %p32 = scmp.ne.s32.totalorder %s24, %s27
      %p33 = scmp.eq.s32.totalorder %s14, 0
      %p34 = por %p32, %p33
      %p35 = scmp.ne.s32.totalorder %s24, %s27
      %p36 = scmp.eq.s32.totalorder %s19, 1
      %p37 = por %p35, %p36
      %p38 = scmp.ne.s32.totalorder %s27, %s28
      %p39 = scmp.eq.s32.totalorder %s19, 0
      %p40 = por %p38, %p39
      %p41 = scmp.ne.s32.totalorder %s27, %s28
      %p42 = scmp.eq.s32.totalorder %s20, 1
      %p43 = por %p41, %p42
      %p45 = scmp.ne.s32.totalorder %s28, %s44
      %p46 = scmp.eq.s32.totalorder %s20, 0
      %p47 = por %p45, %p46
      %s49 = sadd.s32 %s48, 1
      %p52 = scmp.eq.s32.totalorder %s14, 1
      %p53 = scmp.ne.s32.totalorder %s48, %s50
      %p54 = scmp.eq.s32.totalorder %s14, 0
      %p55 = por %p53, %p54
      %p56 = scmp.ne.s32.totalorder %s48, %s50
      %p57 = scmp.eq.s32.totalorder %s19, 1
      %p58 = por %p56, %p57
      %p59 = scmp.ne.s32.totalorder %s50, %s51
      %p60 = scmp.eq.s32.totalorder %s19, 0
      %p61 = por %p59, %p60
      %p62 = scmp.ne.s32.totalorder %s50, %s51
      %p63 = scmp.eq.s32.totalorder %s20, 1
      %p64 = por %p62, %p63
      %p66 = scmp.ne.s32.totalorder %s51, %s65
      %p67 = scmp.eq.s32.totalorder %s20, 0
      %p68 = por %p66, %p67
      %s70 = sadd.s32 %s69, 1
      %p73 = scmp.eq.s32.totalorder %s14, 1
      %p74 = scmp.ne.s32.totalorder %s69, %s71
      %p75 = scmp.eq.s32.totalorder %s14, 0
      %p76 = por %p74, %p75
      %p77 = scmp.ne.s32.totalorder %s69, %s71
      %p78 = scmp.eq.s32.totalorder %s19, 1
      %p79 = por %p77, %p78
      %p80 = scmp.ne.s32.totalorder %s71, %s72
      %p81 = scmp.eq.s32.totalorder %s19, 0
      %p82 = por %p80, %p81
      %p83 = scmp.ne.s32.totalorder %s71, %s72
      %p84 = scmp.eq.s32.totalorder %s20, 1
      %p85 = por %p83, %p84
      %p87 = scmp.ne.s32.totalorder %s72, %s86
      %p88 = scmp.eq.s32.totalorder %s20, 0
      %p89 = por %p87, %p88
      %s91 = sadd.s32 %s90, 1
      %p94 = scmp.eq.s32.totalorder %s14, 1
      %p95 = scmp.ne.s32.totalorder %s90, %s92
      %p96 = scmp.eq.s32.totalorder %s14, 0
      %p97 = por %p95, %p96
      %p98 = scmp.ne.s32.totalorder %s90, %s92
      %p99 = scmp.eq.s32.totalorder %s19, 1
      %p100 = por %p98, %p99
      %p101 = scmp.ne.s32.totalorder %s92, %s93
      %p102 = scmp.eq.s32.totalorder %s19, 0
      %p103 = por %p101, %p102
      %p104 = scmp.ne.s32.totalorder %s92, %s93
      %p105 = scmp.eq.s32.totalorder %s20, 1
      %p106 = por %p104, %p105
      %p108 = scmp.ne.s32.totalorder %s93, %s107
      %p109 = scmp.eq.s32.totalorder %s20, 0
      %p110 = por %p108, %p109
      %s112 = sadd.s32 %s111, 1
      %p115 = scmp.eq.s32.totalorder %s14, 1
      %p116 = scmp.ne.s32.totalorder %s111, %s113
      %p117 = scmp.eq.s32.totalorder %s14, 0
      %p118 = por %p116, %p117
      %p119 = scmp.ne.s32.totalorder %s111, %s113
      %p120 = scmp.eq.s32.totalorder %s19, 1
      %p121 = por %p119, %p120
      %p122 = scmp.ne.s32.totalorder %s113, %s114
      %p123 = scmp.eq.s32.totalorder %s19, 0
      %p124 = por %p122, %p123
      %p125 = scmp.ne.s32.totalorder %s113, %s114
      %p126 = scmp.eq.s32.totalorder %s20, 1
      %p127 = por %p125, %p126
      %p129 = scmp.ne.s32.totalorder %s114, %s128
      %p130 = scmp.eq.s32.totalorder %s20, 0
      %p131 = por %p129, %p130
      %s133 = sadd.s32 %s132, 1
      %p136 = scmp.eq.s32.totalorder %s14, 1
      %p137 = scmp.ne.s32.totalorder %s132, %s134
      %p138 = scmp.eq.s32.totalorder %s14, 0
      %p139 = por %p137, %p138
      %p140 = scmp.ne.s32.totalorder %s132, %s134
      %p141 = scmp.eq.s32.totalorder %s19, 1
      %p142 = por %p140, %p141
      %p143 = scmp.ne.s32.totalorder %s134, %s135
      %p144 = scmp.eq.s32.totalorder %s19, 0
      %p145 = por %p143, %p144
      %p146 = scmp.ne.s32.totalorder %s134, %s135
      %p147 = scmp.eq.s32.totalorder %s20, 1
      %p148 = por %p146, %p147
      %p150 = scmp.ne.s32.totalorder %s135, %s149
      %p151 = scmp.eq.s32.totalorder %s20, 0
      %p152 = por %p150, %p151
      %s153 = ssub.s32 %s14, %s21
      %p154 = scmp.eq.s32.totalorder %s153, 0
      %s156 = sadd.s32 %s155, 1
      %s157 = scalar_select %p154, %s155, %s156
      %p160 = pneg %p154
      %p161 = scmp.eq.s32.totalorder %s14, 1
      %p162 = por %p160, %p161
      %p163 = scmp.ne.s32.totalorder %s155, %s158
      %p164 = scmp.eq.s32.totalorder %s14, 0
      %p165 = por %p163, %p164
      %p166 = scmp.ne.s32.totalorder %s155, %s158
      %p167 = scmp.eq.s32.totalorder %s19, 1
      %p168 = por %p166, %p167
      %p169 = scmp.ne.s32.totalorder %s158, %s159
      %p170 = scmp.eq.s32.totalorder %s19, 0
      %p171 = por %p169, %p170
      %p172 = scmp.ne.s32.totalorder %s158, %s159
      %p173 = scmp.eq.s32.totalorder %s20, 1
      %p174 = por %p172, %p173
      %p176 = scmp.ne.s32.totalorder %s159, %s175
      %p177 = scmp.eq.s32.totalorder %s20, 0
      %p178 = por %p176, %p177
      %s179 = ssub.s32 %s14, %s21
      %p180 = scmp.eq.s32.totalorder %s179, 0
      %s182 = sadd.s32 %s181, 1
      %s183 = scalar_select %p180, %s181, %s182
      %p186 = pneg %p180
      %p187 = scmp.eq.s32.totalorder %s14, 1
      %p188 = por %p186, %p187
      %p189 = scmp.ne.s32.totalorder %s181, %s184
      %p190 = scmp.eq.s32.totalorder %s14, 0
      %p191 = por %p189, %p190
      %p192 = scmp.ne.s32.totalorder %s181, %s184
      %p193 = scmp.eq.s32.totalorder %s19, 1
      %p194 = por %p192, %p193
      %p195 = scmp.ne.s32.totalorder %s184, %s185
      %p196 = scmp.eq.s32.totalorder %s19, 0
      %p197 = por %p195, %p196
      %p198 = scmp.ne.s32.totalorder %s184, %s185
      %p199 = scmp.eq.s32.totalorder %s20, 1
      %p200 = por %p198, %p199
      %p202 = scmp.ne.s32.totalorder %s185, %s201
      %p203 = scmp.eq.s32.totalorder %s20, 0
      %p204 = por %p202, %p203
      %p205 = scmp.le.s32.totalorder 1, %s14
      %p206 = scmp.lt.s32.totalorder %s14, 3
      %p207 = pnand %p205, %p206
      %p208 = pneg %p207
      // Predicated region
      $region9: #{tpu_custom_call.1} parent=5 // pred_check
        _
      $region10: #{tpu_custom_call.1} parent=5 // pred_check_branch
        %210 = sbr.rel (%p207) target = $region12
      $region11: #{tpu_custom_call.1} parent=5 // pred_region
        %s211 = ssub.s32 %s14, 1
        // Predicated region
        $region13: #{tpu_custom_call.1} parent=11 // pred_check
          %p212 = pneg %p61
        $region14: #{tpu_custom_call.1} parent=11 // pred_check_branch
          %214 = sbr.rel (%p212) target = $region16
        $region15: #{tpu_custom_call.1} parent=11 // pred_region
          _
        $region16: #{tpu_custom_call.1} parent=11 // pred_fallthru
          _
        // Predicated region
        $region17: #{tpu_custom_call.1} parent=11 // pred_check
          %p215 = pneg %p82
        $region18: #{tpu_custom_call.1} parent=11 // pred_check_branch
          %217 = sbr.rel (%p215) target = $region20
        $region19: #{tpu_custom_call.1} parent=11 // pred_region
          _
        $region20: #{tpu_custom_call.1} parent=11 // pred_fallthru
          _
        // Predicated region
        $region21: #{tpu_custom_call.1} parent=11 // pred_check
          %p218 = pneg %p103
        $region22: #{tpu_custom_call.1} parent=11 // pred_check_branch
          %220 = sbr.rel (%p218) target = $region24
        $region23: #{tpu_custom_call.1} parent=11 // pred_region
          _
        $region24: #{tpu_custom_call.1} parent=11 // pred_fallthru
          _
        // Predicated region
        $region25: #{tpu_custom_call.1} parent=11 // pred_check
          %p221 = pneg %p124
        $region26: #{tpu_custom_call.1} parent=11 // pred_check_branch
          %223 = sbr.rel (%p221) target = $region28
        $region27: #{tpu_custom_call.1} parent=11 // pred_region
          _
        $region28: #{tpu_custom_call.1} parent=11 // pred_fallthru
          _
        // Predicated region
        $region29: #{tpu_custom_call.1} parent=11 // pred_check
          %p224 = pneg %p145
        $region30: #{tpu_custom_call.1} parent=11 // pred_check_branch
          %226 = sbr.rel (%p224) target = $region32
        $region31: #{tpu_custom_call.1} parent=11 // pred_region
          _
        $region32: #{tpu_custom_call.1} parent=11 // pred_fallthru
          _
      $region12: #{tpu_custom_call.1} parent=5 // pred_fallthru
        _
      %p227 = scmp.lt.s32.totalorder %s14, 2
      // Predicated region
      $region33: #{tpu_custom_call.1} parent=5 // pred_check
        %p228 = pneg %p227
      $region34: #{tpu_custom_call.1} parent=5 // pred_check_branch
        %230 = sbr.rel (%p228) target = $region36
      $region35: #{tpu_custom_call.1} parent=5 // pred_region
        // Predicated region
        $region37: #{tpu_custom_call.1} parent=35 // pred_check
          %p231 = pneg %p34
        $region38: #{tpu_custom_call.1} parent=35 // pred_check_branch
          %233 = sbr.rel (%p231) target = $region40
        $region39: #{tpu_custom_call.1} parent=35 // pred_region
          %s234 = smul.u32 13, %s14
          %s235 = ssub.s32 25, %s234
          %p236 = scmp.lt.s32.totalorder %s235, 13
          %s237 = scalar_select %p236, %s235, 13
          %s238 = smul.u32 128, %s237
          %p239 = scmp.lt.s32.totalorder %s234, 24
          %s240 = scalar_select %p239, %s234, 24
          %s241 = smul.addr %s240, 8
          %s242 = scalar_lea.vmem %s0, %s241
          %s243 = smul.u32 13, %s14
          %s244 = ssub.s32 25, %s243
          %p245 = scmp.lt.s32.totalorder %s244, 13
          %s246 = scalar_select %p245, %s244, 13
          %s247 = smul.u32 128, %s246
        $region40: #{tpu_custom_call.1} parent=35 // pred_fallthru
          _
      $region36: #{tpu_custom_call.1} parent=5 // pred_fallthru
        _
      %p248 = scmp.le.s32.totalorder 1, %s14
      %p249 = scmp.lt.s32.totalorder %s14, 3
      %p250 = pnand %p248, %p249
      %p251 = pneg %p250
      // Predicated region
      $region41: #{tpu_custom_call.1} parent=5 // pred_check
        _
      $region42: #{tpu_custom_call.1} parent=5 // pred_check_branch
        %253 = sbr.rel (%p250) target = $region44
      $region43: #{tpu_custom_call.1} parent=5 // pred_region
        %s254 = ssub.s32 %s14, 1
        %s255 = smul.u32 13, %s19
        %s256 = ssub.s32 25, %s255
        %p257 = scmp.lt.s32.totalorder %s256, 13
        %s258 = scalar_select %p257, %s256, 13
        %s259 = smul.u32 128, %s258
        %p260 = scmp.lt.s32.totalorder %s255, 24
        %s261 = scalar_select %p260, %s255, 24
        %s262 = smul.addr %s261, 8
        %s263 = scalar_lea.vmem %s0, %s262
        %p264 = pneg %p40
        %p265 = pneg %p37
        %p266 = pneg %p61
        %p267 = pneg %p58
        %p268 = pneg %p82
        %p269 = pneg %p79
        %p270 = pneg %p103
        %p271 = pneg %p100
        %p272 = pneg %p124
        %p273 = pneg %p121
        %p274 = pneg %p145
        %p275 = pneg %p142
        %p276 = pneg %p171
        %p277 = pneg %p168
        %s278 = sand.u32 %s158, 1
        %s279 = sand.u32 %s158, 1
        %s280 = smul.addr %s279, 104
        %s281 = scalar_lea.vmem [#allocation2], %s280
        %p282 = pneg %p197
        %p283 = pneg %p194
        %s284 = sand.u32 %s184, 1
        %s285 = sand.u32 %s184, 1
        %s286 = smul.addr %s285, 104
        %s287 = scalar_lea.vmem [#allocation3], %s286
        %s288 = smul.u32 13, %s19
        %s289 = ssub.s32 25, %s288
        %p290 = scmp.lt.s32.totalorder %s289, 13
        %s291 = scalar_select %p290, %s289, 13
        %s292 = smul.u32 128, %s291
        %p293 = scmp.lt.s32.totalorder %s288, 24
        %s294 = scalar_select %p293, %s288, 24
        %s295 = smul.addr %s294, 8
        %s296 = scalar_lea.vmem %s0, %s295
        %s297 = smul.u32 13, %s19
        %s298 = ssub.s32 25, %s297
        %p299 = scmp.lt.s32.totalorder %s298, 13
        %s300 = scalar_select %p299, %s298, 13
        %s301 = smul.u32 128, %s300
        %s302 = smul.u32 13, %s19
        %s303 = ssub.s32 25, %s302
        %p304 = scmp.lt.s32.totalorder %s303, 13
        %s305 = scalar_select %p304, %s303, 13
        %s306 = smul.u32 128, %s305
        %s307 = smul.u32 13, %s19
        %s308 = ssub.s32 25, %s307
        %p309 = scmp.lt.s32.totalorder %s308, 13
        %s310 = scalar_select %p309, %s308, 13
        %s311 = smul.u32 128, %s310
        %v313 = vld [vmem:[%s296] sm:$0xff]
        %v314 = vld [vmem:[%s296 + $0x8] sm:$0xff]
        %v315 = vld [vmem:[%s296 + $0x10] sm:$0xff]
        %v316 = vld [vmem:[%s296 + $0x18] sm:$0xff]
        %v317 = vld [vmem:[%s296 + $0x20] sm:$0xff]
        %v318 = vld [vmem:[%s296 + $0x28] sm:$0xff]
        %v319 = vld [vmem:[%s296 + $0x30] sm:$0xff]
        %v320 = vld [vmem:[%s296 + $0x38] sm:$0xff]
        %v321 = vld [vmem:[%s296 + $0x40] sm:$0xff]
        %v322 = vld [vmem:[%s296 + $0x48] sm:$0xff]
        %v323 = vld [vmem:[%s296 + $0x50] sm:$0xff]
        %v324 = vld [vmem:[%s296 + $0x58] sm:$0xff]
        %v325 = vld [vmem:[%s296 + $0x60] sm:$0xff]
        %v326 = vpack.c.bf16 %v314, %v313
        %v327 = vpack.c.bf16 %v316, %v315
        %v328 = vpack.c.bf16 %v318, %v317
        %v329 = vpack.c.bf16 %v320, %v319
        %v330 = vpack.c.bf16 %v322, %v321
        %v331 = vpack.c.bf16 %v324, %v323
        %v332 = vpack.c.bf16 %v325, %v325
        %v333 = vld [vmem:[%s1] sm:$0xf]
        %v334 = vld [vmem:[%s1 + $0x4] sm:$0xf]
        %v335 = vld [vmem:[%s1 + $0x8] sm:$0xf]
        %v336 = vld [vmem:[%s1 + $0xc] sm:$0xf]
        %v337 = vld [vmem:[%s2] sm:$0x1]
        %v339 = vlaneseq
        %v340 = vshrl.u32 %v339, 7
        %v341 = vsub.s32 0, %v340
        %v342 = vrot.slane %v337, %v341
        %v348 = vunpack.c.l.b16 %v333
        %v349 = vunpack.c.l.b16 %v334
        %v350 = vunpack.c.l.b16 %v335
        %v351 = vunpack.c.l.b16 %v336
        %v352 = vpack.c.b16 %v349, %v348
        %v353 = vpack.c.b16 %v351, %v350
        %vm356 = vcmask 261120
        %v358 = vsel %vm356, %v326, 0
        %v361 = vsel %vm356, %v327, 0
        %v364 = vsel %vm356, %v328, 0
        %v367 = vsel %vm356, %v329, 0
        %v370 = vsel %vm356, %v330, 0
        %v373 = vsel %vm356, %v331, 0
        %v376 = vsel %vm356, %v332, 0
        %378 = vmatprep.subr.bf16.mxu0 0
        %379 = vmatpush1.bf16.msra.mxu0 %v352
        %380 = vmatprep.subr.bf16.mxu0 0
        %381 = vmatpush1.bf16.msra.mxu0 %v353
        %382 = vmatprep.subr.bf16.mxu0 0
        %383 = vmatpush1.bf16.msra.mxu0 0
        %384 = vmatprep.subr.bf16.mxu0 0
        %385 = vmatpush1.bf16.msra.mxu0 0
        %386 = vmatprep.subr.bf16.mxu0 0
        %387 = vmatpush1.bf16.msra.mxu0 0
        %388 = vmatprep.subr.bf16.mxu0 0
        %389 = vmatpush1.bf16.msra.mxu0 0
        %390 = vmatprep.subr.bf16.mxu0 0
        %391 = vmatpush1.bf16.msra.mxu0 0
        %392 = vmatprep.subr.bf16.mxu0 0
        %393 = vmatpush1.bf16.msra.mxu0 0
        %394 = vmatprep.subr.bf16.mxu0 0
        %395 = vmatpush1.bf16.msra.mxu0 0
        %396 = vmatprep.subr.bf16.mxu0 0
        %397 = vmatpush1.bf16.msra.mxu0 0
        %398 = vmatprep.subr.bf16.mxu0 0
        %399 = vmatpush1.bf16.msra.mxu0 0
        %400 = vmatprep.subr.bf16.mxu0 0
        %401 = vmatpush1.bf16.msra.mxu0 0
        %402 = vmatprep.subr.bf16.mxu0 0
        %403 = vmatpush1.bf16.msra.mxu0 0
        %404 = vmatprep.subr.bf16.mxu0 0
        %405 = vmatpush1.bf16.msra.mxu0 0
        %406 = vmatprep.subr.bf16.mxu0 0
        %407 = vmatpush1.bf16.msra.mxu0 0
        %408 = vmatprep.subr.bf16.mxu0 0
        %409 = vmatpush1.bf16.msra.mxu0 0
        %410 = vmatprep.mubr.bf16.mxu0 0
        %411 = vmatmul.mubr.bf16.gmra.mrb[0].mxu0 %v358
        %v412 = vpop.f32.mrb[0].mxu0
        %v413 = vadd.f32 %v342, %v412
        %v414 = vpop.f32.mrb[0].mxu0
        %v415 = vpop.f32.mrb[0].mxu0
        %v416 = vadd.f32 %v342, %v415
        %v417 = vpop.f32.mrb[0].mxu0
        %418 = vmatprep.mubr.bf16.mxu0 0
        %419 = vmatmul.mubr.bf16.gmra.mrb[0].mxu0 %v361
        %v420 = vpop.f32.mrb[0].mxu0
        %v421 = vadd.f32 %v342, %v420
        %v422 = vpop.f32.mrb[0].mxu0
        %v423 = vpop.f32.mrb[0].mxu0
        %v424 = vadd.f32 %v342, %v423
        %v425 = vpop.f32.mrb[0].mxu0
        %426 = vmatprep.mubr.bf16.mxu0 0
        %427 = vmatmul.mubr.bf16.gmra.mrb[0].mxu0 %v364
        %v428 = vpop.f32.mrb[0].mxu0
        %v429 = vadd.f32 %v342, %v428
        %v430 = vpop.f32.mrb[0].mxu0
        %v431 = vpop.f32.mrb[0].mxu0
        %v432 = vadd.f32 %v342, %v431
        %v433 = vpop.f32.mrb[0].mxu0
        %434 = vmatprep.mubr.bf16.mxu0 0
        %435 = vmatmul.mubr.bf16.gmra.mrb[0].mxu0 %v367
        %v436 = vpop.f32.mrb[0].mxu0
        %v437 = vadd.f32 %v342, %v436
        %v438 = vpop.f32.mrb[0].mxu0
        %v439 = vpop.f32.mrb[0].mxu0
        %v440 = vadd.f32 %v342, %v439
        %v441 = vpop.f32.mrb[0].mxu0
        %442 = vmatprep.mubr.bf16.mxu0 0
        %443 = vmatmul.mubr.bf16.gmra.mrb[0].mxu0 %v370
        %v444 = vpop.f32.mrb[0].mxu0
        %v445 = vadd.f32 %v342, %v444
        %v446 = vpop.f32.mrb[0].mxu0
        %v447 = vpop.f32.mrb[0].mxu0
        %v448 = vadd.f32 %v342, %v447
        %v449 = vpop.f32.mrb[0].mxu0
        %450 = vmatprep.mubr.bf16.mxu0 0
        %451 = vmatmul.mubr.bf16.gmra.mrb[0].mxu0 %v373
        %v452 = vpop.f32.mrb[0].mxu0
        %v453 = vadd.f32 %v342, %v452
        %v454 = vpop.f32.mrb[0].mxu0
        %v455 = vpop.f32.mrb[0].mxu0
        %v456 = vadd.f32 %v342, %v455
        %v457 = vpop.f32.mrb[0].mxu0
        %458 = vmatprep.mubr.bf16.mxu0 0
        %459 = vmatmul.mubr.bf16.gmra.mrb[0].mxu0 %v376
        %v460 = vpop.f32.mrb[0].mxu0
        %v461 = vadd.f32 %v342, %v460
        %v462 = vpop.f32.mrb[0].mxu0
        %v463 = vpop.f32.mrb[0].mxu0
        %v464 = vpop.f32.mrb[0].mxu0
        %465 = vdwg.mxu0
        %v466 = vmax.f32 %v413, 0.0
        %v467 = vmax.f32 %v416, 0.0
        %v468 = vmax.f32 %v421, 0.0
        %v469 = vmax.f32 %v424, 0.0
        %v470 = vmax.f32 %v429, 0.0
        %v471 = vmax.f32 %v432, 0.0
        %v472 = vmax.f32 %v437, 0.0
        %v473 = vmax.f32 %v440, 0.0
        %v474 = vmax.f32 %v445, 0.0
        %v475 = vmax.f32 %v448, 0.0
        %v476 = vmax.f32 %v453, 0.0
        %v477 = vmax.f32 %v456, 0.0
        %v478 = vmax.f32 %v461, 0.0
        %v479 = vpack.c.bf16 %v467, %v466
        %v480 = vpack.c.bf16 %v469, %v468
        %v481 = vpack.c.bf16 %v471, %v470
        %v482 = vpack.c.bf16 %v473, %v472
        %v483 = vpack.c.bf16 %v475, %v474
        %v484 = vpack.c.bf16 %v477, %v476
        %v485 = vpack.c.bf16 %v478, %v478
        %v486 = vld [vmem:[%s3] sm:$0xf]
        %v487 = vld [vmem:[%s3 + $0x4] sm:$0xf]
        %v488 = vld [vmem:[%s3 + $0x8] sm:$0xf]
        %v489 = vld [vmem:[%s3 + $0xc] sm:$0xf]
        %v490 = vld [vmem:[%s3 + $0x10] sm:$0xf]
        %v491 = vld [vmem:[%s3 + $0x14] sm:$0xf]
        %v492 = vld [vmem:[%s3 + $0x18] sm:$0xf]
        %v493 = vld [vmem:[%s3 + $0x1c] sm:$0xf]
        %v494 = vld [vmem:[%s4] sm:$0x1]
        %v496 = vlaneseq
        %v497 = vshrl.u32 %v496, 7
        %v498 = vsub.s32 0, %v497
        %v499 = vrot.slane %v494, %v498
        %v509 = vunpack.c.l.b16 %v486
        %v510 = vunpack.c.l.b16 %v487
        %v511 = vunpack.c.l.b16 %v488
        %v512 = vunpack.c.l.b16 %v489
        %v513 = vunpack.c.l.b16 %v490
        %v514 = vunpack.c.l.b16 %v491
        %v515 = vunpack.c.l.b16 %v492
        %v516 = vunpack.c.l.b16 %v493
        %v517 = vpack.c.b16 %v510, %v509
        %v518 = vpack.c.b16 %v512, %v511
        %v519 = vpack.c.b16 %v514, %v513
        %v520 = vpack.c.b16 %v516, %v515
        %vm525 = vcmask 523264
        %v527 = vsel %vm525, %v479, 0
        %v530 = vsel %vm525, %v480, 0
        %v533 = vsel %vm525, %v481, 0
        %v536 = vsel %vm525, %v482, 0
        %v539 = vsel %vm525, %v483, 0
        %v542 = vsel %vm525, %v484, 0
        %v545 = vsel %vm525, %v485, 0
        %547 = vmatprep.subr.bf16.mxu0 0
        %548 = vmatpush1.bf16.msra.mxu0 %v517
        %549 = vmatprep.subr.bf16.mxu0 0
        %550 = vmatpush1.bf16.msra.mxu0 %v518
        %551 = vmatprep.subr.bf16.mxu0 0
        %552 = vmatpush1.bf16.msra.mxu0 %v519
        %553 = vmatprep.subr.bf16.mxu0 0
        %554 = vmatpush1.bf16.msra.mxu0 %v520
        %555 = vmatprep.subr.bf16.mxu0 0
        %556 = vmatpush1.bf16.msra.mxu0 0
        %557 = vmatprep.subr.bf16.mxu0 0
        %558 = vmatpush1.bf16.msra.mxu0 0
        %559 = vmatprep.subr.bf16.mxu0 0
        %560 = vmatpush1.bf16.msra.mxu0 0
        %561 = vmatprep.subr.bf16.mxu0 0
        %562 = vmatpush1.bf16.msra.mxu0 0
        %563 = vmatprep.subr.bf16.mxu0 0
        %564 = vmatpush1.bf16.msra.mxu0 0
        %565 = vmatprep.subr.bf16.mxu0 0
        %566 = vmatpush1.bf16.msra.mxu0 0
        %567 = vmatprep.subr.bf16.mxu0 0
        %568 = vmatpush1.bf16.msra.mxu0 0
        %569 = vmatprep.subr.bf16.mxu0 0
        %570 = vmatpush1.bf16.msra.mxu0 0
        %571 = vmatprep.subr.bf16.mxu0 0
        %572 = vmatpush1.bf16.msra.mxu0 0
        %573 = vmatprep.subr.bf16.mxu0 0
        %574 = vmatpush1.bf16.msra.mxu0 0
        %575 = vmatprep.subr.bf16.mxu0 0
        %576 = vmatpush1.bf16.msra.mxu0 0
        %577 = vmatprep.subr.bf16.mxu0 0
        %578 = vmatpush1.bf16.msra.mxu0 0
        %579 = vmatprep.mubr.bf16.mxu0 0
        %580 = vmatmul.mubr.bf16.gmra.mrb[0].mxu0 %v527
        %v581 = vpop.f32.mrb[0].mxu0
        %v582 = vadd.f32 %v499, %v581
        %v583 = vpop.f32.mrb[0].mxu0
        %v584 = vpop.f32.mrb[0].mxu0
        %v585 = vadd.f32 %v499, %v584
        %v586 = vpop.f32.mrb[0].mxu0
        %587 = vmatprep.mubr.bf16.mxu0 0
        %588 = vmatmul.mubr.bf16.gmra.mrb[0].mxu0 %v530
        %v589 = vpop.f32.mrb[0].mxu0
        %v590 = vadd.f32 %v499, %v589
        %v591 = vpop.f32.mrb[0].mxu0
        %v592 = vpop.f32.mrb[0].mxu0
        %v593 = vadd.f32 %v499, %v592
        %v594 = vpop.f32.mrb[0].mxu0
        %595 = vmatprep.mubr.bf16.mxu0 0
        %596 = vmatmul.mubr.bf16.gmra.mrb[0].mxu0 %v533
        %v597 = vpop.f32.mrb[0].mxu0
        %v598 = vadd.f32 %v499, %v597
        %v599 = vpop.f32.mrb[0].mxu0
        %v600 = vpop.f32.mrb[0].mxu0
        %v601 = vadd.f32 %v499, %v600
        %v602 = vpop.f32.mrb[0].mxu0
        %603 = vmatprep.mubr.bf16.mxu0 0
        %604 = vmatmul.mubr.bf16.gmra.mrb[0].mxu0 %v536
        %v605 = vpop.f32.mrb[0].mxu0
        %v606 = vadd.f32 %v499, %v605
        %v607 = vpop.f32.mrb[0].mxu0
        %v608 = vpop.f32.mrb[0].mxu0
        %v609 = vadd.f32 %v499, %v608
        %v610 = vpop.f32.mrb[0].mxu0
        %611 = vmatprep.mubr.bf16.mxu0 0
        %612 = vmatmul.mubr.bf16.gmra.mrb[0].mxu0 %v539
        %v613 = vpop.f32.mrb[0].mxu0
        %v614 = vadd.f32 %v499, %v613
        %v615 = vpop.f32.mrb[0].mxu0
        %v616 = vpop.f32.mrb[0].mxu0
        %v617 = vadd.f32 %v499, %v616
        %v618 = vpop.f32.mrb[0].mxu0
        %619 = vmatprep.mubr.bf16.mxu0 0
        %620 = vmatmul.mubr.bf16.gmra.mrb[0].mxu0 %v542
        %v621 = vpop.f32.mrb[0].mxu0
        %v622 = vadd.f32 %v499, %v621
        %v623 = vpop.f32.mrb[0].mxu0
        %v624 = vpop.f32.mrb[0].mxu0
        %v625 = vadd.f32 %v499, %v624
        %v626 = vpop.f32.mrb[0].mxu0
        %627 = vmatprep.mubr.bf16.mxu0 0
        %628 = vmatmul.mubr.bf16.gmra.mrb[0].mxu0 %v545
        %v629 = vpop.f32.mrb[0].mxu0
        %v630 = vadd.f32 %v499, %v629
        %v631 = vpop.f32.mrb[0].mxu0
        %v632 = vpop.f32.mrb[0].mxu0
        %v633 = vpop.f32.mrb[0].mxu0
        %634 = vdwg.mxu0
        %v635 = vtanh.pop %v582
        %v636 = vtanh.pop %v585
        %v637 = vtanh.pop %v590
        %v638 = vtanh.pop %v593
        %v639 = vtanh.pop %v598
        %v640 = vtanh.pop %v601
        %v641 = vtanh.pop %v606
        %v642 = vtanh.pop %v609
        %v643 = vtanh.pop %v614
        %v644 = vtanh.pop %v617
        %v645 = vtanh.pop %v622
        %v646 = vtanh.pop %v625
        %v647 = vtanh.pop %v630
        %v648 = vpack.c.bf16 %v636, %v635
        %v649 = vpack.c.bf16 %v638, %v637
        %v650 = vpack.c.bf16 %v640, %v639
        %v651 = vpack.c.bf16 %v642, %v641
        %v652 = vpack.c.bf16 %v644, %v643
        %v653 = vpack.c.bf16 %v646, %v645
        %v654 = vpack.c.bf16 %v647, %v647
        %v655 = vld [vmem:[%s5] sm:$0xf]
        %v656 = vld [vmem:[%s5 + $0x4] sm:$0xf]
        %v657 = vld [vmem:[%s5 + $0x8] sm:$0xf]
        %v658 = vld [vmem:[%s5 + $0xc] sm:$0xf]
        %v659 = vld [vmem:[%s5 + $0x10] sm:$0xf]
        %v660 = vld [vmem:[%s5 + $0x14] sm:$0xf]
        %v661 = vld [vmem:[%s5 + $0x18] sm:$0xf]
        %v662 = vld [vmem:[%s5 + $0x1c] sm:$0xf]
        %v671 = vunpack.c.l.b16 %v655
        %v672 = vunpack.c.l.b16 %v656
        %v673 = vunpack.c.l.b16 %v657
        %v674 = vunpack.c.l.b16 %v658
        %v675 = vunpack.c.l.b16 %v659
        %v676 = vunpack.c.l.b16 %v660
        %v677 = vunpack.c.l.b16 %v661
        %v678 = vunpack.c.l.b16 %v662
        %v679 = vpack.c.b16 %v672, %v671
        %v680 = vpack.c.b16 %v674, %v673
        %v681 = vpack.c.b16 %v676, %v675
        %v682 = vpack.c.b16 %v678, %v677
        %v688 = vsel %vm525, %v648, 0
        %v691 = vsel %vm525, %v649, 0
        %v694 = vsel %vm525, %v650, 0
        %v697 = vsel %vm525, %v651, 0
        %v700 = vsel %vm525, %v652, 0
        %v703 = vsel %vm525, %v653, 0
        %v706 = vsel %vm525, %v654, 0
        %708 = vmatprep.subr.bf16.mxu0 0
        %709 = vmatpush1.bf16.msra.mxu0 %v679
        %710 = vmatprep.subr.bf16.mxu0 0
        %711 = vmatpush1.bf16.msra.mxu0 %v680
        %712 = vmatprep.subr.bf16.mxu0 0
        %713 = vmatpush1.bf16.msra.mxu0 %v681
        %714 = vmatprep.subr.bf16.mxu0 0
        %715 = vmatpush1.bf16.msra.mxu0 %v682
        %716 = vmatprep.subr.bf16.mxu0 0
        %717 = vmatpush1.bf16.msra.mxu0 0
        %718 = vmatprep.subr.bf16.mxu0 0
        %719 = vmatpush1.bf16.msra.mxu0 0
        %720 = vmatprep.subr.bf16.mxu0 0
        %721 = vmatpush1.bf16.msra.mxu0 0
        %722 = vmatprep.subr.bf16.mxu0 0
        %723 = vmatpush1.bf16.msra.mxu0 0
        %724 = vmatprep.subr.bf16.mxu0 0
        %725 = vmatpush1.bf16.msra.mxu0 0
        %726 = vmatprep.subr.bf16.mxu0 0
        %727 = vmatpush1.bf16.msra.mxu0 0
        %728 = vmatprep.subr.bf16.mxu0 0
        %729 = vmatpush1.bf16.msra.mxu0 0
        %730 = vmatprep.subr.bf16.mxu0 0
        %731 = vmatpush1.bf16.msra.mxu0 0
        %732 = vmatprep.subr.bf16.mxu0 0
        %733 = vmatpush1.bf16.msra.mxu0 0
        %734 = vmatprep.subr.bf16.mxu0 0
        %735 = vmatpush1.bf16.msra.mxu0 0
        %736 = vmatprep.subr.bf16.mxu0 0
        %737 = vmatpush1.bf16.msra.mxu0 0
        %738 = vmatprep.subr.bf16.mxu0 0
        %739 = vmatpush1.bf16.msra.mxu0 0
        %740 = vmatprep.mubr.bf16.mxu0 0
        %741 = vmatmul.mubr.bf16.gmra.mrb[0].mxu0 %v688
        %v742 = vpop.f32.mrb[0].mxu0
        %v743 = vadd.f32 0.0, %v742
        %v744 = vpop.f32.mrb[0].mxu0
        %v745 = vpop.f32.mrb[0].mxu0
        %v746 = vadd.f32 0.0, %v745
        %v747 = vpop.f32.mrb[0].mxu0
        %748 = vmatprep.mubr.bf16.mxu0 0
        %749 = vmatmul.mubr.bf16.gmra.mrb[0].mxu0 %v691
        %v750 = vpop.f32.mrb[0].mxu0
        %v751 = vadd.f32 0.0, %v750
        %v752 = vpop.f32.mrb[0].mxu0
        %v753 = vpop.f32.mrb[0].mxu0
        %v754 = vadd.f32 0.0, %v753
        %v755 = vpop.f32.mrb[0].mxu0
        %756 = vmatprep.mubr.bf16.mxu0 0
        %757 = vmatmul.mubr.bf16.gmra.mrb[0].mxu0 %v694
        %v758 = vpop.f32.mrb[0].mxu0
        %v759 = vadd.f32 0.0, %v758
        %v760 = vpop.f32.mrb[0].mxu0
        %v761 = vpop.f32.mrb[0].mxu0
        %v762 = vadd.f32 0.0, %v761
        %v763 = vpop.f32.mrb[0].mxu0
        %764 = vmatprep.mubr.bf16.mxu0 0
        %765 = vmatmul.mubr.bf16.gmra.mrb[0].mxu0 %v697
        %v766 = vpop.f32.mrb[0].mxu0
        %v767 = vadd.f32 0.0, %v766
        %v768 = vpop.f32.mrb[0].mxu0
        %v769 = vpop.f32.mrb[0].mxu0
        %v770 = vadd.f32 0.0, %v769
        %v771 = vpop.f32.mrb[0].mxu0
        %772 = vmatprep.mubr.bf16.mxu0 0
        %773 = vmatmul.mubr.bf16.gmra.mrb[0].mxu0 %v700
        %v774 = vpop.f32.mrb[0].mxu0
        %v775 = vadd.f32 0.0, %v774
        %v776 = vpop.f32.mrb[0].mxu0
        %v777 = vpop.f32.mrb[0].mxu0
        %v778 = vadd.f32 0.0, %v777
        %v779 = vpop.f32.mrb[0].mxu0
        %780 = vmatprep.mubr.bf16.mxu0 0
        %781 = vmatmul.mubr.bf16.gmra.mrb[0].mxu0 %v703
        %v782 = vpop.f32.mrb[0].mxu0
        %v783 = vadd.f32 0.0, %v782
        %v784 = vpop.f32.mrb[0].mxu0
        %v785 = vpop.f32.mrb[0].mxu0
        %v786 = vadd.f32 0.0, %v785
        %v787 = vpop.f32.mrb[0].mxu0
        %788 = vmatprep.mubr.bf16.mxu0 0
        %789 = vmatmul.mubr.bf16.gmra.mrb[0].mxu0 %v706
        %v790 = vpop.f32.mrb[0].mxu0
        %v791 = vadd.f32 0.0, %v790
        %v792 = vpop.f32.mrb[0].mxu0
        %v793 = vpop.f32.mrb[0].mxu0
        %v794 = vpop.f32.mrb[0].mxu0
        %795 = vdwg.mxu0
        %809 = vrot.lane.b32.xlu0 %v743, 64
        %v810 = vpop.permute.xlu0 %809
        %811 = vrot.lane.b32.xlu0 %v746, 64
        %v812 = vpop.permute.xlu0 %811
        %813 = vrot.lane.b32.xlu0 %v751, 64
        %v814 = vpop.permute.xlu0 %813
        %815 = vrot.lane.b32.xlu0 %v754, 64
        %v816 = vpop.permute.xlu0 %815
        %817 = vrot.lane.b32.xlu0 %v759, 64
        %v818 = vpop.permute.xlu0 %817
        %819 = vrot.lane.b32.xlu0 %v762, 64
        %v820 = vpop.permute.xlu0 %819
        %821 = vrot.lane.b32.xlu0 %v767, 64
        %v822 = vpop.permute.xlu0 %821
        %823 = vrot.lane.b32.xlu0 %v770, 64
        %v824 = vpop.permute.xlu0 %823
        %825 = vrot.lane.b32.xlu0 %v775, 64
        %v826 = vpop.permute.xlu0 %825
        %827 = vrot.lane.b32.xlu0 %v778, 64
        %v828 = vpop.permute.xlu0 %827
        %829 = vrot.lane.b32.xlu0 %v783, 64
        %v830 = vpop.permute.xlu0 %829
        %831 = vrot.lane.b32.xlu0 %v786, 64
        %v832 = vpop.permute.xlu0 %831
        %833 = vrot.lane.b32.xlu0 %v791, 64
        %v834 = vpop.permute.xlu0 %833
        %v848 = vadd.f32 %v582, %v810
        %v849 = vadd.f32 %v585, %v812
        %v850 = vadd.f32 %v590, %v814
        %v851 = vadd.f32 %v593, %v816
        %v852 = vadd.f32 %v598, %v818
        %v853 = vadd.f32 %v601, %v820
        %v854 = vadd.f32 %v606, %v822
        %v855 = vadd.f32 %v609, %v824
        %v856 = vadd.f32 %v614, %v826
        %v857 = vadd.f32 %v617, %v828
        %v858 = vadd.f32 %v622, %v830
        %v859 = vadd.f32 %v625, %v832
        %v860 = vadd.f32 %v630, %v834
        %861 = vst.msk [vmem:[%s281] sm:$0xff] %vm525, %v466
        %862 = vst.msk [vmem:[%s281 + $0x8] sm:$0xff] %vm525, %v467
        %863 = vst.msk [vmem:[%s281 + $0x10] sm:$0xff] %vm525, %v468
        %864 = vst.msk [vmem:[%s281 + $0x18] sm:$0xff] %vm525, %v469
        %865 = vst.msk [vmem:[%s281 + $0x20] sm:$0xff] %vm525, %v470
        %866 = vst.msk [vmem:[%s281 + $0x28] sm:$0xff] %vm525, %v471
        %867 = vst.msk [vmem:[%s281 + $0x30] sm:$0xff] %vm525, %v472
        %868 = vst.msk [vmem:[%s281 + $0x38] sm:$0xff] %vm525, %v473
        %869 = vst.msk [vmem:[%s281 + $0x40] sm:$0xff] %vm525, %v474
        %870 = vst.msk [vmem:[%s281 + $0x48] sm:$0xff] %vm525, %v475
        %871 = vst.msk [vmem:[%s281 + $0x50] sm:$0xff] %vm525, %v476
        %872 = vst.msk [vmem:[%s281 + $0x58] sm:$0xff] %vm525, %v477
        %873 = vst.msk [vmem:[%s281 + $0x60] sm:$0xff] %vm525, %v478
        %887 = vrot.lane.b32.xlu0 %v848, 64
        %v888 = vpop.permute.xlu0 %887
        %889 = vrot.lane.b32.xlu0 %v849, 64
        %v890 = vpop.permute.xlu0 %889
        %891 = vrot.lane.b32.xlu0 %v850, 64
        %v892 = vpop.permute.xlu0 %891
        %893 = vrot.lane.b32.xlu0 %v851, 64
        %v894 = vpop.permute.xlu0 %893
        %895 = vrot.lane.b32.xlu0 %v852, 64
        %v896 = vpop.permute.xlu0 %895
        %897 = vrot.lane.b32.xlu0 %v853, 64
        %v898 = vpop.permute.xlu0 %897
        %899 = vrot.lane.b32.xlu0 %v854, 64
        %v900 = vpop.permute.xlu0 %899
        %901 = vrot.lane.b32.xlu0 %v855, 64
        %v902 = vpop.permute.xlu0 %901
        %903 = vrot.lane.b32.xlu0 %v856, 64
        %v904 = vpop.permute.xlu0 %903
        %905 = vrot.lane.b32.xlu0 %v857, 64
        %v906 = vpop.permute.xlu0 %905
        %907 = vrot.lane.b32.xlu0 %v858, 64
        %v908 = vpop.permute.xlu0 %907
        %909 = vrot.lane.b32.xlu0 %v859, 64
        %v910 = vpop.permute.xlu0 %909
        %911 = vrot.lane.b32.xlu0 %v860, 64
        %v912 = vpop.permute.xlu0 %911
        %vm926 = vcmask 130048
        %927 = vst.msk [vmem:[%s287] sm:$0xff] %vm926, %v888
        %928 = vst.msk [vmem:[%s287 + $0x8] sm:$0xff] %vm926, %v890
        %929 = vst.msk [vmem:[%s287 + $0x10] sm:$0xff] %vm926, %v892
        %930 = vst.msk [vmem:[%s287 + $0x18] sm:$0xff] %vm926, %v894
        %931 = vst.msk [vmem:[%s287 + $0x20] sm:$0xff] %vm926, %v896
        %932 = vst.msk [vmem:[%s287 + $0x28] sm:$0xff] %vm926, %v898
        %933 = vst.msk [vmem:[%s287 + $0x30] sm:$0xff] %vm926, %v900
        %934 = vst.msk [vmem:[%s287 + $0x38] sm:$0xff] %vm926, %v902
        %935 = vst.msk [vmem:[%s287 + $0x40] sm:$0xff] %vm926, %v904
        %936 = vst.msk [vmem:[%s287 + $0x48] sm:$0xff] %vm926, %v906
        %937 = vst.msk [vmem:[%s287 + $0x50] sm:$0xff] %vm926, %v908
        %938 = vst.msk [vmem:[%s287 + $0x58] sm:$0xff] %vm926, %v910
        %939 = vst.msk [vmem:[%s287 + $0x60] sm:$0xff] %vm926, %v912
        %s940 = sand.u32 %s158, 1
        %s941 = sand.u32 %s158, 1
        %s942 = smul.addr %s941, 104
        %s943 = scalar_lea.vmem [#allocation2], %s942
        %s944 = sand.u32 %s184, 1
        %s945 = sand.u32 %s184, 1
        %s946 = smul.addr %s945, 104
        %s947 = scalar_lea.vmem [#allocation3], %s946
        // Predicated region
        $region45: #{tpu_custom_call.1} parent=43 // pred_check
          %p948 = pneg %p168
        $region46: #{tpu_custom_call.1} parent=43 // pred_check_branch
          %950 = sbr.rel (%p948) target = $region48
        $region47: #{tpu_custom_call.1} parent=43 // pred_region
          %s951 = smul.u32 13, %s19
          %s952 = ssub.s32 25, %s951
          %p953 = scmp.lt.s32.totalorder %s952, 13
          %s954 = scalar_select %p953, %s952, 13
          %s955 = smul.u32 128, %s954
          %p956 = scmp.ne.s32.totalorder 0, %s955
          %s957 = smul.addr %s951, 8
          %s958 = scalar_lea.vmem %s6, %s957
          // Predicated region
          $region49: #{tpu_custom_call.1} parent=47 // pred_check
            %p959 = pneg %p956
          $region50: #{tpu_custom_call.1} parent=47 // pred_check_branch
            %961 = sbr.rel (%p959) target = $region52
          $region51: #{tpu_custom_call.1} parent=47 // pred_region
            // Predicated region
            $region53: #{tpu_custom_call.1} parent=51 // pred_check
              _
            $region54: #{tpu_custom_call.1} parent=51 // pred_check_branch
              %963 = sbr.rel (0) target = $region56
            $region55: #{tpu_custom_call.1} parent=51 // pred_region
              // Predicated region
              $region75: #{tpu_custom_call.1} parent=55 // pred_check
                _
              $region76: #{tpu_custom_call.1} parent=55 // pred_check_branch
                %1037 = sbr.rel (0) target = $region78
              $region77: #{tpu_custom_call.1} parent=55 // pred_region
                %s1038 = sdiv.u32.pop %s954, 13
                %s1039 = srem.u32.pop %s954, 13
                // While loop
                $region79: #{tpu_custom_call.1} parent=77 // loop_pre_header
                  _
                $region80: #{tpu_custom_call.1} parent=77 // loop_header
                  %s1041 = sphi 0, %s1043
                  %p1042 = scmp.ge.s32.totalorder %s1041, %s1038
                  %s1046 = sphi 0, %s1077
                  %s1047 = sphi %s943, %s1080
                  %s1048 = sphi %s958, %s1081
                $region81: #{tpu_custom_call.1} parent=77 // loop_header_branch
                  %1045 = sbr.rel (%p1042) target = $region85
                $region82: #{tpu_custom_call.1} parent=77 // loop_body
                  %v1049 = vld [vmem:[%s1047] sm:$0xff]
                  %1050 = vst [vmem:[%s1048] sm:$0xff] %v1049
                  %v1051 = vld [vmem:[%s1047 + $0x8] sm:$0xff]
                  %1052 = vst [vmem:[%s1048 + $0x8] sm:$0xff] %v1051
                  %v1053 = vld [vmem:[%s1047 + $0x10] sm:$0xff]
                  %1054 = vst [vmem:[%s1048 + $0x10] sm:$0xff] %v1053
                  %v1055 = vld [vmem:[%s1047 + $0x18] sm:$0xff]
                  %1056 = vst [vmem:[%s1048 + $0x18] sm:$0xff] %v1055
                  %v1057 = vld [vmem:[%s1047 + $0x20] sm:$0xff]
                  %1058 = vst [vmem:[%s1048 + $0x20] sm:$0xff] %v1057
                  %v1059 = vld [vmem:[%s1047 + $0x28] sm:$0xff]
                  %1060 = vst [vmem:[%s1048 + $0x28] sm:$0xff] %v1059
                  %v1061 = vld [vmem:[%s1047 + $0x30] sm:$0xff]
                  %1062 = vst [vmem:[%s1048 + $0x30] sm:$0xff] %v1061
                  %v1063 = vld [vmem:[%s1047 + $0x38] sm:$0xff]
                  %1064 = vst [vmem:[%s1048 + $0x38] sm:$0xff] %v1063
                  %v1065 = vld [vmem:[%s1047 + $0x40] sm:$0xff]
                  %1066 = vst [vmem:[%s1048 + $0x40] sm:$0xff] %v1065
                  %v1067 = vld [vmem:[%s1047 + $0x48] sm:$0xff]
                  %1068 = vst [vmem:[%s1048 + $0x48] sm:$0xff] %v1067
                  %v1069 = vld [vmem:[%s1047 + $0x50] sm:$0xff]
                  %1070 = vst [vmem:[%s1048 + $0x50] sm:$0xff] %v1069
                  %v1071 = vld [vmem:[%s1047 + $0x58] sm:$0xff]
                  %1072 = vst [vmem:[%s1048 + $0x58] sm:$0xff] %v1071
                  %v1073 = vld [vmem:[%s1047 + $0x60] sm:$0xff]
                  %1074 = vst [vmem:[%s1048 + $0x60] sm:$0xff] %v1073
                  %s1075 = sadd.s32 1, %s1046
                  %p1076 = scmp.ge.s32.totalorder %s1075, %s1038
                  %s1077 = scalar_select %p1076, 0, %s1075
                  %s1078 = smul.u32 %s1077, 104
                  %s1079 = smul.u32 %s1077, 104
                  %s1080 = scalar_lea.vmem %s943, %s1078 [#allocation2]
                  %s1081 = scalar_lea.vmem %s958, %s1079
                $region83: #{tpu_custom_call.1} parent=77 // loop_footer
                  %s1043 = sadd.s32 %s1041, 1
                $region84: #{tpu_custom_call.1} parent=77 // loop_footer_branch
                  %1040 = sbr.rel target = $region80
                $region85: #{tpu_custom_call.1} parent=77 // loop_exit
                  _
                %s1082 = sdiv.u32.pop %s954, 13
                %s1083 = srem.u32.pop %s954, 13
                %s1084 = smul.u32 %s1082, 13
                %s1085 = smul.u32 8, %s1084
                %s1086 = scalar_lea.vmem %s943, %s1085 [#allocation2]
                %s1087 = smul.u32 8, %s1084
                %s1088 = scalar_lea.vmem %s958, %s1087
                // While loop
                $region86: #{tpu_custom_call.1} parent=77 // loop_pre_header
                  _
                $region87: #{tpu_custom_call.1} parent=77 // loop_header
                  %s1090 = sphi 0, %s1092
                  %p1091 = scmp.ge.s32.totalorder %s1090, %s1083
                  %s1095 = sphi 0, %s1102
                  %s1096 = sphi %s1086, %s1105
                  %s1097 = sphi %s1088, %s1106
                $region88: #{tpu_custom_call.1} parent=77 // loop_header_branch
                  %1094 = sbr.rel (%p1091) target = $region92
                $region89: #{tpu_custom_call.1} parent=77 // loop_body
                  %v1098 = vld [vmem:[%s1096] sm:$0xff]
                  %1099 = vst [vmem:[%s1097] sm:$0xff] %v1098
                  %s1100 = sadd.s32 1, %s1095
                  %p1101 = scmp.ge.s32.totalorder %s1100, %s1083
                  %s1102 = scalar_select %p1101, 0, %s1100
                  %s1103 = smul.u32 %s1102, 8
                  %s1104 = smul.u32 %s1102, 8
                  %s1105 = scalar_lea.vmem %s1086, %s1103 [#allocation2]
                  %s1106 = scalar_lea.vmem %s1088, %s1104
                $region90: #{tpu_custom_call.1} parent=77 // loop_footer
                  %s1092 = sadd.s32 %s1090, 1
                $region91: #{tpu_custom_call.1} parent=77 // loop_footer_branch
                  %1089 = sbr.rel target = $region87
                $region92: #{tpu_custom_call.1} parent=77 // loop_exit
                  _
              $region78: #{tpu_custom_call.1} parent=55 // pred_fallthru
                _
              // Predicated region
              $region93: #{tpu_custom_call.1} parent=55 // pred_check
                _
              $region94: #{tpu_custom_call.1} parent=55 // pred_check_branch
                %1108 = sbr.rel target = $region96
              $region95: #{tpu_custom_call.1} parent=55 // pred_region
                _
              $region96: #{tpu_custom_call.1} parent=55 // pred_fallthru
                _
            $region56: #{tpu_custom_call.1} parent=51 // pred_fallthru
              _
            // Predicated region
            $region57: #{tpu_custom_call.1} parent=51 // pred_check
              _
            $region58: #{tpu_custom_call.1} parent=51 // pred_check_branch
              %965 = sbr.rel target = $region60
            $region59: #{tpu_custom_call.1} parent=51 // pred_region
              %s967 = sdiv.u32.pop %s954, 13
              %s968 = srem.u32.pop %s954, 13
              // While loop
              $region61: #{tpu_custom_call.1} parent=59 // loop_pre_header
                _
              $region62: #{tpu_custom_call.1} parent=59 // loop_header
                %s970 = sphi 0, %s972
                %p971 = scmp.ge.s32.totalorder %s970, %s967
                %s975 = sphi 0, %s1006
                %s976 = sphi %s943, %s1009
                %s977 = sphi %s958, %s1010
              $region63: #{tpu_custom_call.1} parent=59 // loop_header_branch
                %974 = sbr.rel (%p971) target = $region67
              $region64: #{tpu_custom_call.1} parent=59 // loop_body
                %v978 = vld [vmem:[%s976] sm:$0xff]
                %979 = vst [vmem:[%s977] sm:$0xff] %v978
                %v980 = vld [vmem:[%s976 + $0x8] sm:$0xff]
                %981 = vst [vmem:[%s977 + $0x8] sm:$0xff] %v980
                %v982 = vld [vmem:[%s976 + $0x10] sm:$0xff]
                %983 = vst [vmem:[%s977 + $0x10] sm:$0xff] %v982
                %v984 = vld [vmem:[%s976 + $0x18] sm:$0xff]
                %985 = vst [vmem:[%s977 + $0x18] sm:$0xff] %v984
                %v986 = vld [vmem:[%s976 + $0x20] sm:$0xff]
                %987 = vst [vmem:[%s977 + $0x20] sm:$0xff] %v986
                %v988 = vld [vmem:[%s976 + $0x28] sm:$0xff]
                %989 = vst [vmem:[%s977 + $0x28] sm:$0xff] %v988
                %v990 = vld [vmem:[%s976 + $0x30] sm:$0xff]
                %991 = vst [vmem:[%s977 + $0x30] sm:$0xff] %v990
                %v992 = vld [vmem:[%s976 + $0x38] sm:$0xff]
                %993 = vst [vmem:[%s977 + $0x38] sm:$0xff] %v992
                %v994 = vld [vmem:[%s976 + $0x40] sm:$0xff]
                %995 = vst [vmem:[%s977 + $0x40] sm:$0xff] %v994
                %v996 = vld [vmem:[%s976 + $0x48] sm:$0xff]
                %997 = vst [vmem:[%s977 + $0x48] sm:$0xff] %v996
                %v998 = vld [vmem:[%s976 + $0x50] sm:$0xff]
                %999 = vst [vmem:[%s977 + $0x50] sm:$0xff] %v998
                %v1000 = vld [vmem:[%s976 + $0x58] sm:$0xff]
                %1001 = vst [vmem:[%s977 + $0x58] sm:$0xff] %v1000
                %v1002 = vld [vmem:[%s976 + $0x60] sm:$0xff]
                %1003 = vst [vmem:[%s977 + $0x60] sm:$0xff] %v1002
                %s1004 = sadd.s32 1, %s975
                %p1005 = scmp.ge.s32.totalorder %s1004, %s967
                %s1006 = scalar_select %p1005, 0, %s1004
                %s1007 = smul.u32 %s1006, 104
                %s1008 = smul.u32 %s1006, 104
                %s1009 = scalar_lea.vmem %s943, %s1007 [#allocation2]
                %s1010 = scalar_lea.vmem %s958, %s1008
              $region65: #{tpu_custom_call.1} parent=59 // loop_footer
                %s972 = sadd.s32 %s970, 1
              $region66: #{tpu_custom_call.1} parent=59 // loop_footer_branch
                %969 = sbr.rel target = $region62
              $region67: #{tpu_custom_call.1} parent=59 // loop_exit
                _
              %s1011 = sdiv.u32.pop %s954, 13
              %s1012 = srem.u32.pop %s954, 13
              %s1013 = smul.u32 %s1011, 13
              %s1014 = smul.u32 8, %s1013
              %s1015 = scalar_lea.vmem %s943, %s1014 [#allocation2]
              %s1016 = smul.u32 8, %s1013
              %s1017 = scalar_lea.vmem %s958, %s1016
              // While loop
              $region68: #{tpu_custom_call.1} parent=59 // loop_pre_header
                _
              $region69: #{tpu_custom_call.1} parent=59 // loop_header
                %s1019 = sphi 0, %s1021
                %p1020 = scmp.ge.s32.totalorder %s1019, %s1012
                %s1024 = sphi 0, %s1031
                %s1025 = sphi %s1015, %s1034
                %s1026 = sphi %s1017, %s1035
              $region70: #{tpu_custom_call.1} parent=59 // loop_header_branch
                %1023 = sbr.rel (%p1020) target = $region74
              $region71: #{tpu_custom_call.1} parent=59 // loop_body
                %v1027 = vld [vmem:[%s1025] sm:$0xff]
                %1028 = vst [vmem:[%s1026] sm:$0xff] %v1027
                %s1029 = sadd.s32 1, %s1024
                %p1030 = scmp.ge.s32.totalorder %s1029, %s1012
                %s1031 = scalar_select %p1030, 0, %s1029
                %s1032 = smul.u32 %s1031, 8
                %s1033 = smul.u32 %s1031, 8
                %s1034 = scalar_lea.vmem %s1015, %s1032 [#allocation2]
                %s1035 = scalar_lea.vmem %s1017, %s1033
              $region72: #{tpu_custom_call.1} parent=59 // loop_footer
                %s1021 = sadd.s32 %s1019, 1
              $region73: #{tpu_custom_call.1} parent=59 // loop_footer_branch
                %1018 = sbr.rel target = $region69
              $region74: #{tpu_custom_call.1} parent=59 // loop_exit
                _
            $region60: #{tpu_custom_call.1} parent=51 // pred_fallthru
              _
          $region52: #{tpu_custom_call.1} parent=47 // pred_fallthru
            _
          %1109 = vnop
        $region48: #{tpu_custom_call.1} parent=43 // pred_fallthru
          _
        // Predicated region
        $region97: #{tpu_custom_call.1} parent=43 // pred_check
          %p1110 = pneg %p194
        $region98: #{tpu_custom_call.1} parent=43 // pred_check_branch
          %1112 = sbr.rel (%p1110) target = $region100
        $region99: #{tpu_custom_call.1} parent=43 // pred_region
          %s1113 = smul.u32 13, %s19
          %s1114 = ssub.s32 25, %s1113
          %p1115 = scmp.lt.s32.totalorder %s1114, 13
          %s1116 = scalar_select %p1115, %s1114, 13
          %s1117 = smul.u32 128, %s1116
          %p1118 = scmp.ne.s32.totalorder 0, %s1117
          %s1119 = smul.addr %s1113, 8
          %s1120 = scalar_lea.vmem %s7, %s1119
          // Predicated region
          $region101: #{tpu_custom_call.1} parent=99 // pred_check
            %p1121 = pneg %p1118
          $region102: #{tpu_custom_call.1} parent=99 // pred_check_branch
            %1123 = sbr.rel (%p1121) target = $region104
          $region103: #{tpu_custom_call.1} parent=99 // pred_region
            // Predicated region
            $region105: #{tpu_custom_call.1} parent=103 // pred_check
              _
            $region106: #{tpu_custom_call.1} parent=103 // pred_check_branch
              %1125 = sbr.rel (0) target = $region108
            $region107: #{tpu_custom_call.1} parent=103 // pred_region
              // Predicated region
              $region127: #{tpu_custom_call.1} parent=107 // pred_check
                _
              $region128: #{tpu_custom_call.1} parent=107 // pred_check_branch
                %1199 = sbr.rel (0) target = $region130
              $region129: #{tpu_custom_call.1} parent=107 // pred_region
                %s1200 = sdiv.u32.pop %s1116, 13
                %s1201 = srem.u32.pop %s1116, 13
                // While loop
                $region131: #{tpu_custom_call.1} parent=129 // loop_pre_header
                  _
                $region132: #{tpu_custom_call.1} parent=129 // loop_header
                  %s1203 = sphi 0, %s1205
                  %p1204 = scmp.ge.s32.totalorder %s1203, %s1200
                  %s1208 = sphi 0, %s1239
                  %s1209 = sphi %s947, %s1242
                  %s1210 = sphi %s1120, %s1243
                $region133: #{tpu_custom_call.1} parent=129 // loop_header_branch
                  %1207 = sbr.rel (%p1204) target = $region137
                $region134: #{tpu_custom_call.1} parent=129 // loop_body
                  %v1211 = vld [vmem:[%s1209] sm:$0xff]
                  %1212 = vst [vmem:[%s1210] sm:$0xff] %v1211
                  %v1213 = vld [vmem:[%s1209 + $0x8] sm:$0xff]
                  %1214 = vst [vmem:[%s1210 + $0x8] sm:$0xff] %v1213
                  %v1215 = vld [vmem:[%s1209 + $0x10] sm:$0xff]
                  %1216 = vst [vmem:[%s1210 + $0x10] sm:$0xff] %v1215
                  %v1217 = vld [vmem:[%s1209 + $0x18] sm:$0xff]
                  %1218 = vst [vmem:[%s1210 + $0x18] sm:$0xff] %v1217
                  %v1219 = vld [vmem:[%s1209 + $0x20] sm:$0xff]
                  %1220 = vst [vmem:[%s1210 + $0x20] sm:$0xff] %v1219
                  %v1221 = vld [vmem:[%s1209 + $0x28] sm:$0xff]
                  %1222 = vst [vmem:[%s1210 + $0x28] sm:$0xff] %v1221
                  %v1223 = vld [vmem:[%s1209 + $0x30] sm:$0xff]
                  %1224 = vst [vmem:[%s1210 + $0x30] sm:$0xff] %v1223
                  %v1225 = vld [vmem:[%s1209 + $0x38] sm:$0xff]
                  %1226 = vst [vmem:[%s1210 + $0x38] sm:$0xff] %v1225
                  %v1227 = vld [vmem:[%s1209 + $0x40] sm:$0xff]
                  %1228 = vst [vmem:[%s1210 + $0x40] sm:$0xff] %v1227
                  %v1229 = vld [vmem:[%s1209 + $0x48] sm:$0xff]
                  %1230 = vst [vmem:[%s1210 + $0x48] sm:$0xff] %v1229
                  %v1231 = vld [vmem:[%s1209 + $0x50] sm:$0xff]
                  %1232 = vst [vmem:[%s1210 + $0x50] sm:$0xff] %v1231
                  %v1233 = vld [vmem:[%s1209 + $0x58] sm:$0xff]
                  %1234 = vst [vmem:[%s1210 + $0x58] sm:$0xff] %v1233
                  %v1235 = vld [vmem:[%s1209 + $0x60] sm:$0xff]
                  %1236 = vst [vmem:[%s1210 + $0x60] sm:$0xff] %v1235
                  %s1237 = sadd.s32 1, %s1208
                  %p1238 = scmp.ge.s32.totalorder %s1237, %s1200
                  %s1239 = scalar_select %p1238, 0, %s1237
                  %s1240 = smul.u32 %s1239, 104
                  %s1241 = smul.u32 %s1239, 104
                  %s1242 = scalar_lea.vmem %s947, %s1240 [#allocation3]
                  %s1243 = scalar_lea.vmem %s1120, %s1241
                $region135: #{tpu_custom_call.1} parent=129 // loop_footer
                  %s1205 = sadd.s32 %s1203, 1
                $region136: #{tpu_custom_call.1} parent=129 // loop_footer_branch
                  %1202 = sbr.rel target = $region132
                $region137: #{tpu_custom_call.1} parent=129 // loop_exit
                  _
                %s1244 = sdiv.u32.pop %s1116, 13
                %s1245 = srem.u32.pop %s1116, 13
                %s1246 = smul.u32 %s1244, 13
                %s1247 = smul.u32 8, %s1246
                %s1248 = scalar_lea.vmem %s947, %s1247 [#allocation3]
                %s1249 = smul.u32 8, %s1246
                %s1250 = scalar_lea.vmem %s1120, %s1249
                // While loop
                $region138: #{tpu_custom_call.1} parent=129 // loop_pre_header
                  _
                $region139: #{tpu_custom_call.1} parent=129 // loop_header
                  %s1252 = sphi 0, %s1254
                  %p1253 = scmp.ge.s32.totalorder %s1252, %s1245
                  %s1257 = sphi 0, %s1264
                  %s1258 = sphi %s1248, %s1267
                  %s1259 = sphi %s1250, %s1268
                $region140: #{tpu_custom_call.1} parent=129 // loop_header_branch
                  %1256 = sbr.rel (%p1253) target = $region144
                $region141: #{tpu_custom_call.1} parent=129 // loop_body
                  %v1260 = vld [vmem:[%s1258] sm:$0xff]
                  %1261 = vst [vmem:[%s1259] sm:$0xff] %v1260
                  %s1262 = sadd.s32 1, %s1257
                  %p1263 = scmp.ge.s32.totalorder %s1262, %s1245
                  %s1264 = scalar_select %p1263, 0, %s1262
                  %s1265 = smul.u32 %s1264, 8
                  %s1266 = smul.u32 %s1264, 8
                  %s1267 = scalar_lea.vmem %s1248, %s1265 [#allocation3]
                  %s1268 = scalar_lea.vmem %s1250, %s1266
                $region142: #{tpu_custom_call.1} parent=129 // loop_footer
                  %s1254 = sadd.s32 %s1252, 1
                $region143: #{tpu_custom_call.1} parent=129 // loop_footer_branch
                  %1251 = sbr.rel target = $region139
                $region144: #{tpu_custom_call.1} parent=129 // loop_exit
                  _
              $region130: #{tpu_custom_call.1} parent=107 // pred_fallthru
                _
              // Predicated region
              $region145: #{tpu_custom_call.1} parent=107 // pred_check
                _
              $region146: #{tpu_custom_call.1} parent=107 // pred_check_branch
                %1270 = sbr.rel target = $region148
              $region147: #{tpu_custom_call.1} parent=107 // pred_region
                _
              $region148: #{tpu_custom_call.1} parent=107 // pred_fallthru
                _
            $region108: #{tpu_custom_call.1} parent=103 // pred_fallthru
              _
            // Predicated region
            $region109: #{tpu_custom_call.1} parent=103 // pred_check
              _
            $region110: #{tpu_custom_call.1} parent=103 // pred_check_branch
              %1127 = sbr.rel target = $region112
            $region111: #{tpu_custom_call.1} parent=103 // pred_region
              %s1129 = sdiv.u32.pop %s1116, 13
              %s1130 = srem.u32.pop %s1116, 13
              // While loop
              $region113: #{tpu_custom_call.1} parent=111 // loop_pre_header
                _
              $region114: #{tpu_custom_call.1} parent=111 // loop_header
                %s1132 = sphi 0, %s1134
                %p1133 = scmp.ge.s32.totalorder %s1132, %s1129
                %s1137 = sphi 0, %s1168
                %s1138 = sphi %s947, %s1171
                %s1139 = sphi %s1120, %s1172
              $region115: #{tpu_custom_call.1} parent=111 // loop_header_branch
                %1136 = sbr.rel (%p1133) target = $region119
              $region116: #{tpu_custom_call.1} parent=111 // loop_body
                %v1140 = vld [vmem:[%s1138] sm:$0xff]
                %1141 = vst [vmem:[%s1139] sm:$0xff] %v1140
                %v1142 = vld [vmem:[%s1138 + $0x8] sm:$0xff]
                %1143 = vst [vmem:[%s1139 + $0x8] sm:$0xff] %v1142
                %v1144 = vld [vmem:[%s1138 + $0x10] sm:$0xff]
                %1145 = vst [vmem:[%s1139 + $0x10] sm:$0xff] %v1144
                %v1146 = vld [vmem:[%s1138 + $0x18] sm:$0xff]
                %1147 = vst [vmem:[%s1139 + $0x18] sm:$0xff] %v1146
                %v1148 = vld [vmem:[%s1138 + $0x20] sm:$0xff]
                %1149 = vst [vmem:[%s1139 + $0x20] sm:$0xff] %v1148
                %v1150 = vld [vmem:[%s1138 + $0x28] sm:$0xff]
                %1151 = vst [vmem:[%s1139 + $0x28] sm:$0xff] %v1150
                %v1152 = vld [vmem:[%s1138 + $0x30] sm:$0xff]
                %1153 = vst [vmem:[%s1139 + $0x30] sm:$0xff] %v1152
                %v1154 = vld [vmem:[%s1138 + $0x38] sm:$0xff]
                %1155 = vst [vmem:[%s1139 + $0x38] sm:$0xff] %v1154
                %v1156 = vld [vmem:[%s1138 + $0x40] sm:$0xff]
                %1157 = vst [vmem:[%s1139 + $0x40] sm:$0xff] %v1156
                %v1158 = vld [vmem:[%s1138 + $0x48] sm:$0xff]
                %1159 = vst [vmem:[%s1139 + $0x48] sm:$0xff] %v1158
                %v1160 = vld [vmem:[%s1138 + $0x50] sm:$0xff]
                %1161 = vst [vmem:[%s1139 + $0x50] sm:$0xff] %v1160
                %v1162 = vld [vmem:[%s1138 + $0x58] sm:$0xff]
                %1163 = vst [vmem:[%s1139 + $0x58] sm:$0xff] %v1162
                %v1164 = vld [vmem:[%s1138 + $0x60] sm:$0xff]
                %1165 = vst [vmem:[%s1139 + $0x60] sm:$0xff] %v1164
                %s1166 = sadd.s32 1, %s1137
                %p1167 = scmp.ge.s32.totalorder %s1166, %s1129
                %s1168 = scalar_select %p1167, 0, %s1166
                %s1169 = smul.u32 %s1168, 104
                %s1170 = smul.u32 %s1168, 104
                %s1171 = scalar_lea.vmem %s947, %s1169 [#allocation3]
                %s1172 = scalar_lea.vmem %s1120, %s1170
              $region117: #{tpu_custom_call.1} parent=111 // loop_footer
                %s1134 = sadd.s32 %s1132, 1
              $region118: #{tpu_custom_call.1} parent=111 // loop_footer_branch
                %1131 = sbr.rel target = $region114
              $region119: #{tpu_custom_call.1} parent=111 // loop_exit
                _
              %s1173 = sdiv.u32.pop %s1116, 13
              %s1174 = srem.u32.pop %s1116, 13
              %s1175 = smul.u32 %s1173, 13
              %s1176 = smul.u32 8, %s1175
              %s1177 = scalar_lea.vmem %s947, %s1176 [#allocation3]
              %s1178 = smul.u32 8, %s1175
              %s1179 = scalar_lea.vmem %s1120, %s1178
              // While loop
              $region120: #{tpu_custom_call.1} parent=111 // loop_pre_header
                _
              $region121: #{tpu_custom_call.1} parent=111 // loop_header
                %s1181 = sphi 0, %s1183
                %p1182 = scmp.ge.s32.totalorder %s1181, %s1174
                %s1186 = sphi 0, %s1193
                %s1187 = sphi %s1177, %s1196
                %s1188 = sphi %s1179, %s1197
              $region122: #{tpu_custom_call.1} parent=111 // loop_header_branch
                %1185 = sbr.rel (%p1182) target = $region126
              $region123: #{tpu_custom_call.1} parent=111 // loop_body
                %v1189 = vld [vmem:[%s1187] sm:$0xff]
                %1190 = vst [vmem:[%s1188] sm:$0xff] %v1189
                %s1191 = sadd.s32 1, %s1186
                %p1192 = scmp.ge.s32.totalorder %s1191, %s1174
                %s1193 = scalar_select %p1192, 0, %s1191
                %s1194 = smul.u32 %s1193, 8
                %s1195 = smul.u32 %s1193, 8
                %s1196 = scalar_lea.vmem %s1177, %s1194 [#allocation3]
                %s1197 = scalar_lea.vmem %s1179, %s1195
              $region124: #{tpu_custom_call.1} parent=111 // loop_footer
                %s1183 = sadd.s32 %s1181, 1
              $region125: #{tpu_custom_call.1} parent=111 // loop_footer_branch
                %1180 = sbr.rel target = $region121
              $region126: #{tpu_custom_call.1} parent=111 // loop_exit
                _
            $region112: #{tpu_custom_call.1} parent=103 // pred_fallthru
              _
          $region104: #{tpu_custom_call.1} parent=99 // pred_fallthru
            _
          %1271 = vnop
        $region100: #{tpu_custom_call.1} parent=43 // pred_fallthru
          _
      $region44: #{tpu_custom_call.1} parent=5 // pred_fallthru
        _
      %p1272 = scmp.le.s32.totalorder 2, %s14
      // Predicated region
      $region149: #{tpu_custom_call.1} parent=5 // pred_check
        %p1273 = pneg %p1272
      $region150: #{tpu_custom_call.1} parent=5 // pred_check_branch
        %1275 = sbr.rel (%p1273) target = $region152
      $region151: #{tpu_custom_call.1} parent=5 // pred_region
        %s1276 = ssub.s32 %s14, 2
        // Predicated region
        $region153: #{tpu_custom_call.1} parent=151 // pred_check
          %p1277 = pneg %p174
        $region154: #{tpu_custom_call.1} parent=151 // pred_check_branch
          %1279 = sbr.rel (%p1277) target = $region156
        $region155: #{tpu_custom_call.1} parent=151 // pred_region
          %s1280 = sand.u32 %s159, 1
          %s1281 = sand.u32 %s159, 1
          %s1282 = smul.addr %s1281, 104
          %s1283 = scalar_lea.vmem [#allocation2], %s1282
        $region156: #{tpu_custom_call.1} parent=151 // pred_fallthru
          _
        // Predicated region
        $region157: #{tpu_custom_call.1} parent=151 // pred_check
          %p1284 = pneg %p200
        $region158: #{tpu_custom_call.1} parent=151 // pred_check_branch
          %1286 = sbr.rel (%p1284) target = $region160
        $region159: #{tpu_custom_call.1} parent=151 // pred_region
          %s1287 = sand.u32 %s185, 1
          %s1288 = sand.u32 %s185, 1
          %s1289 = smul.addr %s1288, 104
          %s1290 = scalar_lea.vmem [#allocation3], %s1289
        $region160: #{tpu_custom_call.1} parent=151 // pred_fallthru
          _
      $region152: #{tpu_custom_call.1} parent=5 // pred_fallthru
        _
    $region6: #{tpu_custom_call.1} parent=1 // loop_footer
      %s18 = sadd.s32 1, %s14
    $region7: #{tpu_custom_call.1} parent=1 // loop_footer_branch
      %13 = sbr.rel target = $region3
    $region8: #{tpu_custom_call.1} parent=1 // loop_exit
      _

</llo_original>
